<compile_context>
chip_gen: v5e
topology: v5e:2x2
jax: 0.10.0
libtpu: 0.0.40
codegen_flags: <defaults>
</compile_context>

<pallas_src>
import functools
import math

import jax
import jax.numpy as jnp
from jax import lax
from jax.experimental import pallas as pl
from jax.experimental.pallas import tpu as pltpu

D_MODEL = 384
CONTEXT_SIZE = 100
HEAD_SIZE = 64


def _round_up(x, m):
    return ((x + m - 1) // m) * m


def _pick_block_b(batch, block_b):
    """Largest BB <= block_b that divides batch (no batch padding), capped at ceil(batch/2)
    so the grid has at least two steps whenever batch >= 2 (v7x dual-TensorCore sharding)."""
    cap = max(1, min(block_b, (batch + 1) // 2))
    for bb in range(cap, 0, -1):
        if batch % bb == 0:
            return bb
    return 1


def _head_kernel(x_ref, w_ref, o_ref, *, compute_dtype):
    bb, t, c = x_ref.shape
    f = w_ref.shape[-1]                 # 3 * Hp  (Hp = head_size padded to a 128-lane tile)
    hp = f // 3
    cdt = compute_dtype

    # Cast to the MXU input dtype in-kernel (hidden under the pipeline; no extra HBM pass).
    x = x_ref[...].astype(cdt)          # (BB, T, C)
    w = w_ref[...]                      # (C, 3*Hp); sqrt(H) already folded into the Wq part

    # Fused QKV projection with f32 accumulation.
    if t % 8 == 0:
        # (BB, T) collapse is sublane-aligned -> free reshape, one big MXU pass.
        qkv = jnp.dot(x.reshape(bb * t, c), w, preferred_element_type=jnp.float32)
        qkv = qkv.reshape(bb, t, f)
    else:
        # A non-multiple-of-8 T collapse would force a VMEM relayout copy; do BB
        # back-to-back 2D matmuls instead (contiguous MXU pushes).
        qkv = jnp.stack(
            [jnp.dot(x[b], w, preferred_element_type=jnp.float32) for b in range(bb)])

    # 128-lane-aligned slices (Hp is a multiple of 128) -> no masked relayout copies.
    q = qkv[:, :, 0 * hp:1 * hp]
    k = qkv[:, :, 1 * hp:2 * hp]
    v = qkv[:, :, 2 * hp:3 * hp]

    # Scores: contract the (zero-padded) head axis of both operands -> MXU-direct, no XLU
    # transpose; the zero pad lanes contribute exactly 0.
    wei = jnp.einsum("btd,bsd->bts", q.astype(cdt), k.astype(cdt),
                     preferred_element_type=jnp.float32)        # (BB, T, T) f32

    # Causal mask (tril == 0 -> -inf).  T is not padded, so every row keeps its diagonal
    # and no row can become all -inf.
    row = lax.broadcasted_iota(jnp.int32, (t, t), 0)
    col = lax.broadcasted_iota(jnp.int32, (t, t), 1)
    wei = jnp.where((col <= row)[None, :, :], wei, -jnp.inf)

    # Softmax in f32; normalization moved after the PV matmul (divide T*Hp elems instead of
    # T*T) using the EUP approx reciprocal.
    m = jnp.max(wei, axis=-1, keepdims=True)
    e = jnp.exp(wei - m)
    denom = jnp.sum(e, axis=-1, keepdims=True)                  # (BB, T, 1)

    pv = jnp.einsum("bts,bsd->btd", e.astype(cdt), v.astype(cdt),
                    preferred_element_type=jnp.float32)         # (BB, T, Hp) f32
    out = pv * pl.reciprocal(denom, approx=True)

    # Lane-dense (Hp multiple of 128) unmasked stores; pad lanes sliced off in the wrapper.
    o_ref[...] = out.astype(o_ref.dtype)


def head_forward(x, wq, wk, wv, *, compute_dtype=jnp.bfloat16, block_b=16):
    """Single attention head forward (eval mode).

    x        : (B, T, C) with C == d_model.
    wq/wk/wv : (C, H) -- pre-transposed vs nn.Linear's (H, C) weight, so y = x @ W.
    compute_dtype : MXU input dtype (default bf16; accumulation & softmax always f32).
    """
    B, T, C = x.shape
    H = wq.shape[1]
    out_dtype = x.dtype
    HP = _round_up(H, 128)

    # Fused, lane-padded weight [Wq*sqrt(H)|0 | Wk|0 | Wv|0] -> (C, 3*HP).
    # The reference's inverted scale (/ H**-0.5 == * sqrt(H)) is folded into Wq here (a
    # one-time weight hoist); the zero padding keeps every q/k/v slice and the output
    # 128-lane aligned and is mathematically exact.
    scale = jnp.asarray(math.sqrt(H), wq.dtype)
    pad = ((0, 0), (0, HP - H))
    w_qkv = jnp.concatenate(
        [jnp.pad(wq * scale, pad), jnp.pad(wk, pad), jnp.pad(wv, pad)], axis=1
    ).astype(compute_dtype)

    BB = _pick_block_b(B, block_b)

    out = pl.pallas_call(
        functools.partial(_head_kernel, compute_dtype=compute_dtype),
        out_shape=jax.ShapeDtypeStruct((B, T, HP), out_dtype),
        grid_spec=pltpu.PrefetchScalarGridSpec(
            num_scalar_prefetch=0,
            grid=(B // BB,),
            in_specs=[
                pl.BlockSpec((BB, T, C), lambda b: (b, 0, 0)),   # T full-extent, C % 128 == 0
                pl.BlockSpec((C, 3 * HP), lambda b: (0, 0)),     # fused weight, resident
            ],
            out_specs=pl.BlockSpec((BB, T, HP), lambda b: (b, 0, 0)),
        ),
        compiler_params=pltpu.CompilerParams(
            dimension_semantics=("parallel",),
            # Explicit limit so larger BB stays safe under v5e's 16 MiB scoped default while
            # remaining inside v7x's 64 MiB physical VMEM.
            vmem_limit_bytes=48 * 1024 * 1024,
        ),
    )(x, w_qkv)

    # Drop the zero pad lanes (one contiguous XLA slice; keeps in-kernel stores unmasked).
    return out[:, :, :H]


def head_reference(x, wq, wk, wv):
    """Pure-JAX reference mirroring the PyTorch forward (eval mode)."""
    q = x @ wq
    k = x @ wk
    v = x @ wv
    wei = (q @ jnp.swapaxes(k, -2, -1)) / (k.shape[-1] ** (-0.5))
    T = x.shape[1]
    tril = jnp.tril(jnp.ones((CONTEXT_SIZE, CONTEXT_SIZE), jnp.float32))[:T, :T]
    wei = jnp.where(tril == 0, -jnp.inf, wei)
    wei = jax.nn.softmax(wei, axis=-1)
    return wei @ v


if __name__ == "__main__":
    B, T = 2, 8
    key = jax.random.PRNGKey(0)
    kx, kq, kk, kv = jax.random.split(key, 4)

    x = jax.random.normal(kx, (B, T, D_MODEL), dtype=jnp.float32)
    # nn.Linear(d_model, head_size, bias=False) weight is (head_size, d_model); initialize
    # deterministically and store transposed as (d_model, head_size).
    bound = 1.0 / math.sqrt(D_MODEL)
    wq = jax.random.uniform(kq, (D_MODEL, HEAD_SIZE), jnp.float32, -bound, bound)
    wk = jax.random.uniform(kk, (D_MODEL, HEAD_SIZE), jnp.float32, -bound, bound)
    wv = jax.random.uniform(kv, (D_MODEL, HEAD_SIZE), jnp.float32, -bound, bound)

    ref = head_reference(x, wq, wk, wv)

    # Default path: bf16 MXU inputs, f32 accumulation/softmax (looser numerics by design).
    out_bf16 = jax.block_until_ready(head_forward(x, wq, wk, wv))
    assert out_bf16.shape == (B, T, HEAD_SIZE)
    assert jnp.allclose(out_bf16, ref, atol=1.5e-1, rtol=1.5e-1), \
        float(jnp.max(jnp.abs(out_bf16 - ref)))

    # f32 MXU-input path (matches the reference up to the EUP approx reciprocal).
    out_f32 = jax.block_until_ready(
        head_forward(x, wq, wk, wv, compute_dtype=jnp.float32))
    assert out_f32.shape == (B, T, HEAD_SIZE)
    assert jnp.allclose(out_f32, ref, atol=2e-3, rtol=2e-3), \
        float(jnp.max(jnp.abs(out_f32 - ref)))

    print("KERNEL_OK")
</pallas_src>

<mosaic_0001>
module attributes {stable_mosaic.version = 11 : i64} {
  func.func @_head_kernel(%arg0: i32, %arg1: memref<1x8x384xf32, #tpu.memory_space<vmem>>, %arg2: memref<384x384xbf16, #tpu.memory_space<vmem>>, %arg3: memref<1x8x128xf32, #tpu.memory_space<vmem>>) attributes {dimension_semantics = [#tpu.dimension_semantics<parallel>], iteration_bounds = array<i64: 2>, scalar_prefetch = 0 : i64, scratch_operands = 0 : i64, tpu.core_type = #tpu.core_type<tc>, window_params = [{transform_indices = @transform_0, window_bounds = array<i64: 1, 8, 384>}, {pipeline_mode = #tpu.pipeline_mode<synchronous>, transform_indices = @transform_1, window_bounds = array<i64: 384, 384>}, {transform_indices = @transform_2, window_bounds = array<i64: 1, 8, 128>}]} {
    %c0 = arith.constant 0 : index
    %c0_0 = arith.constant 0 : index
    %c0_1 = arith.constant 0 : index
    %0 = vector.load %arg1[%c0, %c0_0, %c0_1] : memref<1x8x384xf32, #tpu.memory_space<vmem>>, vector<1x8x384xf32>
    %1 = arith.truncf %0 : vector<1x8x384xf32> to vector<1x8x384xbf16>
    %c0_2 = arith.constant 0 : index
    %c0_3 = arith.constant 0 : index
    %2 = vector.load %arg2[%c0_2, %c0_3] : memref<384x384xbf16, #tpu.memory_space<vmem>>, vector<384x384xbf16>
    %3 = vector.shape_cast %1 : vector<1x8x384xbf16> to vector<8x384xbf16>
    %cst = arith.constant dense<0.000000e+00> : vector<8x384xf32>
    %4 = tpu.matmul %3, %2, %cst {dimension_numbers = #tpu.dot_dimension_numbers<[1], [0], [0], [1], [0, 0, 1, 1], [], []>} : vector<8x384xbf16>, vector<384x384xbf16>, vector<8x384xf32> -> vector<8x384xf32>
    %5 = vector.shape_cast %4 : vector<8x384xf32> to vector<1x8x384xf32>
    %6 = vector.extract_strided_slice %5 {offsets = [0, 0, 0], sizes = [1, 8, 128], strides = [1, 1, 1]} : vector<1x8x384xf32> to vector<1x8x128xf32>
    %7 = vector.extract_strided_slice %5 {offsets = [0, 0, 128], sizes = [1, 8, 128], strides = [1, 1, 1]} : vector<1x8x384xf32> to vector<1x8x128xf32>
    %8 = vector.extract_strided_slice %5 {offsets = [0, 0, 256], sizes = [1, 8, 128], strides = [1, 1, 1]} : vector<1x8x384xf32> to vector<1x8x128xf32>
    %9 = arith.truncf %6 : vector<1x8x128xf32> to vector<1x8x128xbf16>
    %10 = arith.truncf %7 : vector<1x8x128xf32> to vector<1x8x128xbf16>
    "tpu.trace_start"() <{level = 10 : i32, message = "btd,bsd->bts"}> : () -> ()
    %cst_4 = arith.constant dense<0.000000e+00> : vector<1x8x8xf32>
    %11 = tpu.matmul %9, %10, %cst_4 {dimension_numbers = #tpu.dot_dimension_numbers<[2], [2], [1], [1], [0, 0, 0, 1, 1, 1], [0], [0]>} : vector<1x8x128xbf16>, vector<1x8x128xbf16>, vector<1x8x8xf32> -> vector<1x8x8xf32>
    "tpu.trace_stop"() : () -> ()
    %12 = tpu.iota {dimensions = array<i32: 0>} : vector<8x8xi32>
    %13 = tpu.iota {dimensions = array<i32: 1>} : vector<8x8xi32>
    %14 = arith.cmpi sle, %13, %12 : vector<8x8xi32>
    %15 = vector.shape_cast %14 : vector<8x8xi1> to vector<1x8x8xi1>
    %cst_5 = arith.constant 0xFF800000 : f32
    %16 = vector.broadcast %cst_5 : f32 to vector<1x8x8xf32>
    %17 = arith.select %15, %11, %16 : vector<1x8x8xi1>, vector<1x8x8xf32>
    %cst_6 = arith.constant dense<0xFF800000> : vector<1x8xf32>
    %18 = vector.multi_reduction <maximumf>, %17, %cst_6 [2] : vector<1x8x8xf32> to vector<1x8xf32>
    %19 = vector.shape_cast %18 : vector<1x8xf32> to vector<1x8x1xf32>
    %20 = vector.broadcast %19 : vector<1x8x1xf32> to vector<1x8x8xf32>
    %21 = arith.subf %17, %20 : vector<1x8x8xf32>
    %22 = math.exp %21 : vector<1x8x8xf32>
    %cst_7 = arith.constant dense<0.000000e+00> : vector<1x8xf32>
    %23 = vector.multi_reduction <add>, %22, %cst_7 [2] : vector<1x8x8xf32> to vector<1x8xf32>
    %24 = vector.shape_cast %23 : vector<1x8xf32> to vector<1x8x1xf32>
    %25 = arith.truncf %22 : vector<1x8x8xf32> to vector<1x8x8xbf16>
    %26 = arith.truncf %8 : vector<1x8x128xf32> to vector<1x8x128xbf16>
    "tpu.trace_start"() <{level = 10 : i32, message = "bts,bsd->btd"}> : () -> ()
    %cst_8 = arith.constant dense<0.000000e+00> : vector<1x8x128xf32>
    %27 = tpu.matmul %25, %26, %cst_8 {dimension_numbers = #tpu.dot_dimension_numbers<[2], [1], [1], [2], [0, 0, 0, 1, 1, 2], [0], [0]>} : vector<1x8x8xbf16>, vector<1x8x128xbf16>, vector<1x8x128xf32> -> vector<1x8x128xf32>
    "tpu.trace_stop"() : () -> ()
    %28 = tpu.reciprocal %24 {approx = true} : vector<1x8x1xf32> -> vector<1x8x1xf32>
    %29 = vector.broadcast %28 : vector<1x8x1xf32> to vector<1x8x128xf32>
    %30 = arith.mulf %27, %29 : vector<1x8x128xf32>
    %c0_9 = arith.constant 0 : index
    %c0_10 = arith.constant 0 : index
    %c0_11 = arith.constant 0 : index
    %31 = vector.load %arg3[%c0_9, %c0_10, %c0_11] : memref<1x8x128xf32, #tpu.memory_space<vmem>>, vector<1x8x128xf32>
    tpu.vector_store %arg3[%c0_9, %c0_10, %c0_11], %30 {strides = array<i32>} : memref<1x8x128xf32, #tpu.memory_space<vmem>>, vector<1x8x128xf32>,
    return
  }
  func.func @transform_0(%arg0: i32) -> (i32, i32, i32) {
    %c0_i32 = arith.constant 0 : i32
    %c0_i32_0 = arith.constant 0 : i32
    %c0_i32_1 = arith.constant 0 : i32
    return %arg0, %c0_i32, %c0_i32_0 : i32, i32, i32
  }
  func.func @transform_1(%arg0: i32) -> (i32, i32) {
    %c0_i32 = arith.constant 0 : i32
    %c0_i32_0 = arith.constant 0 : i32
    %c0_i32_1 = arith.constant 0 : i32
    return %c0_i32, %c0_i32_0 : i32, i32
  }
  func.func @transform_2(%arg0: i32) -> (i32, i32, i32) {
    %c0_i32 = arith.constant 0 : i32
    %c0_i32_0 = arith.constant 0 : i32
    %c0_i32_1 = arith.constant 0 : i32
    return %arg0, %c0_i32, %c0_i32_0 : i32, i32, i32
  }
}

</mosaic_0001>

<llo_original>
// kernel: tpu_custom_call.1
$region0: #{tpu_custom_call.1}
  #allocation0 [shape = 'u32[]', space=smem, size = 0x4, offset = 0x4, fixed_abs, tag = 'smem constant byte address 0x4 - core index']
  #allocation1 [shape = 'u32[72,128]{1,0:T(1,128)}', space=vmem, size = 0x9000, scoped, tag = 'internal scratch']
  %s0 = inlined_call_operand.hbm [shape: f32[2,8,384], index: 0, kind: input, shape index: {}]
  %s1 = inlined_call_operand.hbm [shape: bf16[384,384], index: 1, kind: input, shape index: {}]
  %s2 = inlined_call_operand.hbm [shape: f32[2,8,128], index: 2, kind: output, shape index: {}]
  %s3 = sld [smem:[#allocation0]]
  $region49: #{tpu_custom_call.1} parent=0
    _
  %s5 = ssub.s32 1, %s3
  %s6 = scalar_select 0, %s5, %s3
  $region1: #{tpu_custom_call.1} parent=0
    #allocation2 [shape = 'u8[24576]{0}', space=vmem, size = 0x6000, scoped, tag = 'input window, operand 0']
    #allocation3 [shape = 's32[2]{0}', space=sflag, size = 0x8, scoped, tag = 'scoped memory for tpu_custom_call.1']
    #allocation4 [shape = 's32[2]{0}', space=sflag, size = 0x8, scoped, tag = 'scoped memory for tpu_custom_call.1']
    #allocation5 [shape = 'u8[294912]{0}', space=vmem, size = 0x48000, scoped, tag = 'input window, operand 1, single buffered']
    #allocation6 [shape = 's32[1]{0}', space=sflag, size = 0x4, scoped, tag = 'scoped memory for tpu_custom_call.1']
    #allocation7 [shape = 'u8[8192]{0}', space=vmem, size = 0x2000, scoped, tag = 'output window, operand 0']
    %7 = vsyncpa [#allocation3], 0
    %s8 = scalar_lea.sflag [#allocation3], 1
    %9 = vsyncpa %s8, 0
    %10 = vsyncpa [#allocation6], 0
    %11 = vsyncpa [#allocation4], 0
    %s12 = scalar_lea.sflag [#allocation4], 1
    %13 = vsyncpa %s12, 0
    loop: start=0, step=1, limit=4
    $region2: #{tpu_custom_call.1} parent=1 // loop_pre_header
      _
    $region3: #{tpu_custom_call.1} parent=1 // loop_header
      %s15 = sphi 0, %s19
      %p16 = scmp.ge.s32.totalorder %s15, 4
      %s25 = sphi 0, %s27
      %s28 = sphi 0, %s25
      %s29 = sphi 0, %s28
      %s45 = sphi 0, %s29
      %s49 = sphi 0, %s49
      %s51 = sphi 0, %s49
      %s52 = sphi 0, %s51
      %s66 = sphi 0, %s52
      %s72 = sphi 0, %s74
      %s75 = sphi 0, %s72
      %s76 = sphi 0, %s75
      %s92 = sphi 0, %s76
    $region4: #{tpu_custom_call.1} parent=1 // loop_header_branch
      %18 = sbr.rel (%p16) target = $region8
    $region5: #{tpu_custom_call.1} parent=1 // loop_body
      %s20 = ssub.s32 %s15, 1
      %s21 = ssub.s32 %s15, 2
      %s22 = sadd.s32 %s15, 1
      %s23 = ssub.s32 %s15, %s22
      %p24 = scmp.eq.s32.totalorder %s23, 0
      %s26 = sadd.s32 %s25, 1
      %s27 = scalar_select %p24, %s25, %s26
      %p30 = pneg %p24
      %p31 = scmp.eq.s32.totalorder %s15, 1
      %p32 = por %p30, %p31
      %p33 = scmp.ne.s32.totalorder %s25, %s28
      %p34 = scmp.eq.s32.totalorder %s15, 0
      %p35 = por %p33, %p34
      %p36 = scmp.ne.s32.totalorder %s25, %s28
      %p37 = scmp.eq.s32.totalorder %s20, 1
      %p38 = por %p36, %p37
      %p39 = scmp.ne.s32.totalorder %s28, %s29
      %p40 = scmp.eq.s32.totalorder %s20, 0
      %p41 = por %p39, %p40
      %p42 = scmp.ne.s32.totalorder %s28, %s29
      %p43 = scmp.eq.s32.totalorder %s21, 1
      %p44 = por %p42, %p43
      %p46 = scmp.ne.s32.totalorder %s29, %s45
      %p47 = scmp.eq.s32.totalorder %s21, 0
      %p48 = por %p46, %p47
      %s50 = sadd.s32 %s49, 1
      %p53 = scmp.eq.s32.totalorder %s15, 1
      %p54 = scmp.ne.s32.totalorder %s49, %s51
      %p55 = scmp.eq.s32.totalorder %s15, 0
      %p56 = por %p54, %p55
      %p57 = scmp.ne.s32.totalorder %s49, %s51
      %p58 = scmp.eq.s32.totalorder %s20, 1
      %p59 = por %p57, %p58
      %p60 = scmp.ne.s32.totalorder %s51, %s52
      %p61 = scmp.eq.s32.totalorder %s20, 0
      %p62 = por %p60, %p61
      %p63 = scmp.ne.s32.totalorder %s51, %s52
      %p64 = scmp.eq.s32.totalorder %s21, 1
      %p65 = por %p63, %p64
      %p67 = scmp.ne.s32.totalorder %s52, %s66
      %p68 = scmp.eq.s32.totalorder %s21, 0
      %p69 = por %p67, %p68
      %s70 = ssub.s32 %s15, %s22
      %p71 = scmp.eq.s32.totalorder %s70, 0
      %s73 = sadd.s32 %s72, 1
      %s74 = scalar_select %p71, %s72, %s73
      %p77 = pneg %p71
      %p78 = scmp.eq.s32.totalorder %s15, 1
      %p79 = por %p77, %p78
      %p80 = scmp.ne.s32.totalorder %s72, %s75
      %p81 = scmp.eq.s32.totalorder %s15, 0
      %p82 = por %p80, %p81
      %p83 = scmp.ne.s32.totalorder %s72, %s75
      %p84 = scmp.eq.s32.totalorder %s20, 1
      %p85 = por %p83, %p84
      %p86 = scmp.ne.s32.totalorder %s75, %s76
      %p87 = scmp.eq.s32.totalorder %s20, 0
      %p88 = por %p86, %p87
      %p89 = scmp.ne.s32.totalorder %s75, %s76
      %p90 = scmp.eq.s32.totalorder %s21, 1
      %p91 = por %p89, %p90
      %p93 = scmp.ne.s32.totalorder %s76, %s92
      %p94 = scmp.eq.s32.totalorder %s21, 0
      %p95 = por %p93, %p94
      %p96 = scmp.le.s32.totalorder 1, %s15
      %p97 = scmp.lt.s32.totalorder %s15, 3
      %p98 = pnand %p96, %p97
      %p99 = pneg %p98
      // Predicated region
      $region9: #{tpu_custom_call.1} parent=5 // pred_check
        _
      $region10: #{tpu_custom_call.1} parent=5 // pred_check_branch
        %101 = sbr.rel (%p98) target = $region12
      $region11: #{tpu_custom_call.1} parent=5 // pred_region
        %s102 = ssub.s32 %s15, 1
        // Predicated region
        $region13: #{tpu_custom_call.1} parent=11 // pred_check
          %p103 = pneg %p62
        $region14: #{tpu_custom_call.1} parent=11 // pred_check_branch
          %105 = sbr.rel (%p103) target = $region16
        $region15: #{tpu_custom_call.1} parent=11 // pred_region
          %107 = vsyncadd [#allocation6], 0
          %s108 = sshll.u32 %s1, 4
          %s109 = int_to_ptr.hbm [resolvable:$true] %s108
          %s110 = sshll.u32 [#allocation5], 4
          %s111 = int_to_ptr.vmem [resolvable:$true] %s110
          %116 = dma.hbm_to_vmem [thread:$0]  %s109, 9216, %s111, [#allocation6], 192, 192, 12
        $region16: #{tpu_custom_call.1} parent=11 // pred_fallthru
          _
      $region12: #{tpu_custom_call.1} parent=5 // pred_fallthru
        _
      %p117 = scmp.lt.s32.totalorder %s15, 2
      // Predicated region
      $region17: #{tpu_custom_call.1} parent=5 // pred_check
        %p118 = pneg %p117
      $region18: #{tpu_custom_call.1} parent=5 // pred_check_branch
        %120 = sbr.rel (%p118) target = $region20
      $region19: #{tpu_custom_call.1} parent=5 // pred_region
        // Predicated region
        $region21: #{tpu_custom_call.1} parent=19 // pred_check
          %p121 = pneg %p35
        $region22: #{tpu_custom_call.1} parent=19 // pred_check_branch
          %123 = sbr.rel (%p121) target = $region24
        $region23: #{tpu_custom_call.1} parent=19 // pred_region
          %s124 = sand.u32 %s25, 1
          %s125 = scalar_lea.sflag [#allocation3], %s124
          %s126 = sand.u32 %s25, 1
          %s127 = smul.addr %s126, 24
          %s128 = scalar_lea.vmem [#allocation2], %s127
          %130 = vsyncadd %s125, 0
          %s131 = smul.addr %s15, 3
          %s132 = smul.addr %s131, 8
          %s133 = scalar_lea.hbm %s0, %s132
          %s135 = sshll.u32 %s133, 4
          %s136 = int_to_ptr.hbm [resolvable:$true] %s135
          %s137 = sshll.u32 %s128, 4
          %s138 = int_to_ptr.vmem [resolvable:$true] %s137
          %140 = dma.hbm_to_vmem [thread:$0]  %s136, 384, %s138, %s125
        $region24: #{tpu_custom_call.1} parent=19 // pred_fallthru
          _
      $region20: #{tpu_custom_call.1} parent=5 // pred_fallthru
        _
      %p141 = scmp.le.s32.totalorder 1, %s15
      %p142 = scmp.lt.s32.totalorder %s15, 3
      %p143 = pnand %p141, %p142
      %p144 = pneg %p143
      // Predicated region
      $region25: #{tpu_custom_call.1} parent=5 // pred_check
        _
      $region26: #{tpu_custom_call.1} parent=5 // pred_check_branch
        %146 = sbr.rel (%p143) target = $region28
      $region27: #{tpu_custom_call.1} parent=5 // pred_region
        %s147 = ssub.s32 %s15, 1
        %s148 = sand.u32 %s28, 1
        %s149 = scalar_lea.sflag [#allocation3], %s148
        %s150 = sand.u32 %s28, 1
        %s151 = smul.addr %s150, 24
        %s152 = scalar_lea.vmem [#allocation2], %s151
        // Predicated region
        $region29: #{tpu_custom_call.1} parent=27 // pred_check
          %p153 = pneg %p41
        $region30: #{tpu_custom_call.1} parent=27 // pred_check_branch
          %155 = sbr.rel (%p153) target = $region32
        $region31: #{tpu_custom_call.1} parent=27 // pred_region
          %157 = dma.done %s149, 384
        $region32: #{tpu_custom_call.1} parent=27 // pred_fallthru
          _
        // Predicated region
        $region33: #{tpu_custom_call.1} parent=27 // pred_check
          %p158 = pneg %p62
        $region34: #{tpu_custom_call.1} parent=27 // pred_check_branch
          %160 = sbr.rel (%p158) target = $region36
        $region35: #{tpu_custom_call.1} parent=27 // pred_region
          %162 = dma.done [#allocation6], 9216
        $region36: #{tpu_custom_call.1} parent=27 // pred_fallthru
          _
        %s163 = sand.u32 %s28, 1
        %s164 = scalar_lea.sflag [#allocation3], %s163
        %s165 = sand.u32 %s28, 1
        %s166 = smul.addr %s165, 24
        %s167 = scalar_lea.vmem [#allocation2], %s166
        %p168 = pneg %p41
        %p169 = pneg %p38
        %p170 = pneg %p62
        %p171 = pneg %p59
        %p172 = pneg %p88
        %p173 = pneg %p85
        %s174 = sand.u32 %s75, 1
        %s175 = scalar_lea.sflag [#allocation4], %s174
        %s176 = sand.u32 %s75, 1
        %s177 = smul.addr %s176, 8
        %s178 = scalar_lea.vmem [#allocation7], %s177
        %v180 = vld [vmem:[%s152] sm:$0xff]
        %v181 = vld [vmem:[%s152 + $0x8] sm:$0xff]
        %v182 = vld [vmem:[%s152 + $0x10] sm:$0xff]
        %v183 = vpack.c.bf16 %v181, %v180
        %v184 = vpack.c.bf16 %v182, %v182
        %v185 = vld [vmem:[#allocation5] sm:$0xff]
        %v186 = vld [vmem:[#allocation5 + $0x8] sm:$0xf]
        %v187 = vld [vmem:[#allocation5 + $0xc] sm:$0xff]
        %v188 = vld [vmem:[#allocation5 + $0x14] sm:$0xf]
        %v189 = vld [vmem:[#allocation5 + $0x18] sm:$0xff]
        %v190 = vld [vmem:[#allocation5 + $0x20] sm:$0xf]
        %v191 = vld [vmem:[#allocation5 + $0x24] sm:$0xff]
        %v192 = vld [vmem:[#allocation5 + $0x2c] sm:$0xf]
        %v193 = vld [vmem:[#allocation5 + $0x30] sm:$0xff]
        %v194 = vld [vmem:[#allocation5 + $0x38] sm:$0xf]
        %v195 = vld [vmem:[#allocation5 + $0x3c] sm:$0xff]
        %v196 = vld [vmem:[#allocation5 + $0x44] sm:$0xf]
        %v197 = vld [vmem:[#allocation5 + $0x48] sm:$0xff]
        %v198 = vld [vmem:[#allocation5 + $0x50] sm:$0xf]
        %v199 = vld [vmem:[#allocation5 + $0x54] sm:$0xff]
        %v200 = vld [vmem:[#allocation5 + $0x5c] sm:$0xf]
        %v201 = vld [vmem:[#allocation5 + $0x60] sm:$0xff]
        %v202 = vld [vmem:[#allocation5 + $0x68] sm:$0xf]
        %v203 = vld [vmem:[#allocation5 + $0x6c] sm:$0xff]
        %v204 = vld [vmem:[#allocation5 + $0x74] sm:$0xf]
        %v205 = vld [vmem:[#allocation5 + $0x78] sm:$0xff]
        %v206 = vld [vmem:[#allocation5 + $0x80] sm:$0xf]
        %v207 = vld [vmem:[#allocation5 + $0x84] sm:$0xff]
        %v208 = vld [vmem:[#allocation5 + $0x8c] sm:$0xf]
        %v209 = vld [vmem:[#allocation5 + $0x90] sm:$0xff]
        %v210 = vld [vmem:[#allocation5 + $0x98] sm:$0xf]
        %v211 = vld [vmem:[#allocation5 + $0x9c] sm:$0xff]
        %v212 = vld [vmem:[#allocation5 + $0xa4] sm:$0xf]
        %v213 = vld [vmem:[#allocation5 + $0xa8] sm:$0xff]
        %v214 = vld [vmem:[#allocation5 + $0xb0] sm:$0xf]
        %v215 = vld [vmem:[#allocation5 + $0xb4] sm:$0xff]
        %v216 = vld [vmem:[#allocation5 + $0xbc] sm:$0xf]
        %v217 = vld [vmem:[#allocation5 + $0xc0] sm:$0xff]
        %v218 = vld [vmem:[#allocation5 + $0xc8] sm:$0xf]
        %v219 = vld [vmem:[#allocation5 + $0xcc] sm:$0xff]
        %v220 = vld [vmem:[#allocation5 + $0xd4] sm:$0xf]
        %v221 = vld [vmem:[#allocation5 + $0xd8] sm:$0xff]
        %v222 = vld [vmem:[#allocation5 + $0xe0] sm:$0xf]
        %v223 = vld [vmem:[#allocation5 + $0xe4] sm:$0xff]
        %v224 = vld [vmem:[#allocation5 + $0xec] sm:$0xf]
        %v225 = vld [vmem:[#allocation5 + $0xf0] sm:$0xff]
        %v226 = vld [vmem:[#allocation5 + $0xf8] sm:$0xf]
        %v227 = vld [vmem:[#allocation5 + $0xfc] sm:$0xff]
        %v228 = vld [vmem:[#allocation5 + $0x104] sm:$0xf]
        %v229 = vld [vmem:[#allocation5 + $0x108] sm:$0xff]
        %v230 = vld [vmem:[#allocation5 + $0x110] sm:$0xf]
        %v231 = vld [vmem:[#allocation5 + $0x114] sm:$0xff]
        %v232 = vld [vmem:[#allocation5 + $0x11c] sm:$0xf]
        %v233 = vld [vmem:[#allocation5 + $0x120] sm:$0xff]
        %v234 = vld [vmem:[#allocation5 + $0x128] sm:$0xf]
        %v235 = vld [vmem:[#allocation5 + $0x12c] sm:$0xff]
        %v236 = vld [vmem:[#allocation5 + $0x134] sm:$0xf]
        %v237 = vld [vmem:[#allocation5 + $0x138] sm:$0xff]
        %v238 = vld [vmem:[#allocation5 + $0x140] sm:$0xf]
        %v239 = vld [vmem:[#allocation5 + $0x144] sm:$0xff]
        %v240 = vld [vmem:[#allocation5 + $0x14c] sm:$0xf]
        %v241 = vld [vmem:[#allocation5 + $0x150] sm:$0xff]
        %v242 = vld [vmem:[#allocation5 + $0x158] sm:$0xf]
        %v243 = vld [vmem:[#allocation5 + $0x15c] sm:$0xff]
        %v244 = vld [vmem:[#allocation5 + $0x164] sm:$0xf]
        %v245 = vld [vmem:[#allocation5 + $0x168] sm:$0xff]
        %v246 = vld [vmem:[#allocation5 + $0x170] sm:$0xf]
        %v247 = vld [vmem:[#allocation5 + $0x174] sm:$0xff]
        %v248 = vld [vmem:[#allocation5 + $0x17c] sm:$0xf]
        %v249 = vld [vmem:[#allocation5 + $0x180] sm:$0xff]
        %v250 = vld [vmem:[#allocation5 + $0x188] sm:$0xf]
        %v251 = vld [vmem:[#allocation5 + $0x18c] sm:$0xff]
        %v252 = vld [vmem:[#allocation5 + $0x194] sm:$0xf]
        %v253 = vld [vmem:[#allocation5 + $0x198] sm:$0xff]
        %v254 = vld [vmem:[#allocation5 + $0x1a0] sm:$0xf]
        %v255 = vld [vmem:[#allocation5 + $0x1a4] sm:$0xff]
        %v256 = vld [vmem:[#allocation5 + $0x1ac] sm:$0xf]
        %v257 = vld [vmem:[#allocation5 + $0x1b0] sm:$0xff]
        %v258 = vld [vmem:[#allocation5 + $0x1b8] sm:$0xf]
        %v259 = vld [vmem:[#allocation5 + $0x1bc] sm:$0xff]
        %v260 = vld [vmem:[#allocation5 + $0x1c4] sm:$0xf]
        %v261 = vld [vmem:[#allocation5 + $0x1c8] sm:$0xff]
        %v262 = vld [vmem:[#allocation5 + $0x1d0] sm:$0xf]
        %v263 = vld [vmem:[#allocation5 + $0x1d4] sm:$0xff]
        %v264 = vld [vmem:[#allocation5 + $0x1dc] sm:$0xf]
        %v265 = vld [vmem:[#allocation5 + $0x1e0] sm:$0xff]
        %v266 = vld [vmem:[#allocation5 + $0x1e8] sm:$0xf]
        %v267 = vld [vmem:[#allocation5 + $0x1ec] sm:$0xff]
        %v268 = vld [vmem:[#allocation5 + $0x1f4] sm:$0xf]
        %v269 = vld [vmem:[#allocation5 + $0x1f8] sm:$0xff]
        %v270 = vld [vmem:[#allocation5 + $0x200] sm:$0xf]
        %v271 = vld [vmem:[#allocation5 + $0x204] sm:$0xff]
        %v272 = vld [vmem:[#allocation5 + $0x20c] sm:$0xf]
        %v273 = vld [vmem:[#allocation5 + $0x210] sm:$0xff]
        %v274 = vld [vmem:[#allocation5 + $0x218] sm:$0xf]
        %v275 = vld [vmem:[#allocation5 + $0x21c] sm:$0xff]
        %v276 = vld [vmem:[#allocation5 + $0x224] sm:$0xf]
        %v277 = vld [vmem:[#allocation5 + $0x228] sm:$0xff]
        %v278 = vld [vmem:[#allocation5 + $0x230] sm:$0xf]
        %v279 = vld [vmem:[#allocation5 + $0x234] sm:$0xff]
        %v280 = vld [vmem:[#allocation5 + $0x23c] sm:$0xf]
        %v283 = vunpack.c.l.b16 %v183
        %v284 = vunpack.c.h.b16 %v183
        %v285 = vunpack.c.l.b16 %v184
        %v286 = vpack.c.b16 %v283, %v283
        %v287 = vpack.c.b16 %v284, %v284
        %v288 = vpack.c.b16 %v285, %v285
        %v388 = vunpack.c.l.b16 %v185
        %v389 = vunpack.c.h.b16 %v185
        %v390 = vunpack.c.l.b16 %v186
        %v391 = vunpack.c.l.b16 %v187
        %v392 = vunpack.c.h.b16 %v187
        %v393 = vunpack.c.l.b16 %v188
        %v394 = vunpack.c.l.b16 %v189
        %v395 = vunpack.c.h.b16 %v189
        %v396 = vunpack.c.l.b16 %v190
        %v397 = vunpack.c.l.b16 %v191
        %v398 = vunpack.c.h.b16 %v191
        %v399 = vunpack.c.l.b16 %v192
        %v400 = vunpack.c.l.b16 %v193
        %v401 = vunpack.c.h.b16 %v193
        %v402 = vunpack.c.l.b16 %v194
        %v403 = vunpack.c.l.b16 %v195
        %v404 = vunpack.c.h.b16 %v195
        %v405 = vunpack.c.l.b16 %v196
        %v406 = vunpack.c.l.b16 %v197
        %v407 = vunpack.c.h.b16 %v197
        %v408 = vunpack.c.l.b16 %v198
        %v409 = vunpack.c.l.b16 %v199
        %v410 = vunpack.c.h.b16 %v199
        %v411 = vunpack.c.l.b16 %v200
        %v412 = vunpack.c.l.b16 %v201
        %v413 = vunpack.c.h.b16 %v201
        %v414 = vunpack.c.l.b16 %v202
        %v415 = vunpack.c.l.b16 %v203
        %v416 = vunpack.c.h.b16 %v203
        %v417 = vunpack.c.l.b16 %v204
        %v418 = vunpack.c.l.b16 %v205
        %v419 = vunpack.c.h.b16 %v205
        %v420 = vunpack.c.l.b16 %v206
        %v421 = vunpack.c.l.b16 %v207
        %v422 = vunpack.c.h.b16 %v207
        %v423 = vunpack.c.l.b16 %v208
        %v424 = vunpack.c.l.b16 %v209
        %v425 = vunpack.c.h.b16 %v209
        %v426 = vunpack.c.l.b16 %v210
        %v427 = vunpack.c.l.b16 %v211
        %v428 = vunpack.c.h.b16 %v211
        %v429 = vunpack.c.l.b16 %v212
        %v430 = vunpack.c.l.b16 %v213
        %v431 = vunpack.c.h.b16 %v213
        %v432 = vunpack.c.l.b16 %v214
        %v433 = vunpack.c.l.b16 %v215
        %v434 = vunpack.c.h.b16 %v215
        %v435 = vunpack.c.l.b16 %v216
        %v436 = vunpack.c.l.b16 %v217
        %v437 = vunpack.c.h.b16 %v217
        %v438 = vunpack.c.l.b16 %v218
        %v439 = vunpack.c.l.b16 %v219
        %v440 = vunpack.c.h.b16 %v219
        %v441 = vunpack.c.l.b16 %v220
        %v442 = vunpack.c.l.b16 %v221
        %v443 = vunpack.c.h.b16 %v221
        %v444 = vunpack.c.l.b16 %v222
        %v445 = vunpack.c.l.b16 %v223
        %v446 = vunpack.c.h.b16 %v223
        %v447 = vunpack.c.l.b16 %v224
        %v448 = vunpack.c.l.b16 %v225
        %v449 = vunpack.c.h.b16 %v225
        %v450 = vunpack.c.l.b16 %v226
        %v451 = vunpack.c.l.b16 %v227
        %v452 = vunpack.c.h.b16 %v227
        %v453 = vunpack.c.l.b16 %v228
        %v454 = vunpack.c.l.b16 %v229
        %v455 = vunpack.c.h.b16 %v229
        %v456 = vunpack.c.l.b16 %v230
        %v457 = vunpack.c.l.b16 %v231
        %v458 = vunpack.c.h.b16 %v231
        %v459 = vunpack.c.l.b16 %v232
        %v460 = vunpack.c.l.b16 %v233
        %v461 = vunpack.c.h.b16 %v233
        %v462 = vunpack.c.l.b16 %v234
        %v463 = vunpack.c.l.b16 %v235
        %v464 = vunpack.c.h.b16 %v235
        %v465 = vunpack.c.l.b16 %v236
        %v466 = vunpack.c.l.b16 %v237
        %v467 = vunpack.c.h.b16 %v237
        %v468 = vunpack.c.l.b16 %v238
        %v469 = vunpack.c.l.b16 %v239
        %v470 = vunpack.c.h.b16 %v239
        %v471 = vunpack.c.l.b16 %v240
        %v472 = vunpack.c.l.b16 %v241
        %v473 = vunpack.c.h.b16 %v241
        %v474 = vunpack.c.l.b16 %v242
        %v475 = vunpack.c.l.b16 %v243
        %v476 = vunpack.c.h.b16 %v243
        %v477 = vunpack.c.l.b16 %v244
        %v478 = vunpack.c.l.b16 %v245
        %v479 = vunpack.c.h.b16 %v245
        %v480 = vunpack.c.l.b16 %v246
        %v481 = vunpack.c.l.b16 %v247
        %v482 = vunpack.c.h.b16 %v247
        %v483 = vunpack.c.l.b16 %v248
        %v484 = vunpack.c.l.b16 %v249
        %v485 = vunpack.c.h.b16 %v249
        %v486 = vunpack.c.l.b16 %v250
        %v487 = vunpack.c.l.b16 %v251
        %v488 = vunpack.c.h.b16 %v251
        %v489 = vunpack.c.l.b16 %v252
        %v490 = vunpack.c.l.b16 %v253
        %v491 = vunpack.c.h.b16 %v253
        %v492 = vunpack.c.l.b16 %v254
        %v493 = vunpack.c.l.b16 %v255
        %v494 = vunpack.c.h.b16 %v255
        %v495 = vunpack.c.l.b16 %v256
        %v496 = vunpack.c.l.b16 %v257
        %v497 = vunpack.c.h.b16 %v257
        %v498 = vunpack.c.l.b16 %v258
        %v499 = vunpack.c.l.b16 %v259
        %v500 = vunpack.c.h.b16 %v259
        %v501 = vunpack.c.l.b16 %v260
        %v502 = vunpack.c.l.b16 %v261
        %v503 = vunpack.c.h.b16 %v261
        %v504 = vunpack.c.l.b16 %v262
        %v505 = vunpack.c.l.b16 %v263
        %v506 = vunpack.c.h.b16 %v263
        %v507 = vunpack.c.l.b16 %v264
        %v508 = vunpack.c.l.b16 %v265
        %v509 = vunpack.c.h.b16 %v265
        %v510 = vunpack.c.l.b16 %v266
        %v511 = vunpack.c.l.b16 %v267
        %v512 = vunpack.c.h.b16 %v267
        %v513 = vunpack.c.l.b16 %v268
        %v514 = vunpack.c.l.b16 %v269
        %v515 = vunpack.c.h.b16 %v269
        %v516 = vunpack.c.l.b16 %v270
        %v517 = vunpack.c.l.b16 %v271
        %v518 = vunpack.c.h.b16 %v271
        %v519 = vunpack.c.l.b16 %v272
        %v520 = vunpack.c.l.b16 %v273
        %v521 = vunpack.c.h.b16 %v273
        %v522 = vunpack.c.l.b16 %v274
        %v523 = vunpack.c.l.b16 %v275
        %v524 = vunpack.c.h.b16 %v275
        %v525 = vunpack.c.l.b16 %v276
        %v526 = vunpack.c.l.b16 %v277
        %v527 = vunpack.c.h.b16 %v277
        %v528 = vunpack.c.l.b16 %v278
        %v529 = vunpack.c.l.b16 %v279
        %v530 = vunpack.c.h.b16 %v279
        %v531 = vunpack.c.l.b16 %v280
        %v532 = vpack.c.b16 %v391, %v388
        %v533 = vpack.c.b16 %v392, %v389
        %v534 = vpack.c.b16 %v393, %v390
        %v535 = vpack.c.b16 %v397, %v394
        %v536 = vpack.c.b16 %v398, %v395
        %v537 = vpack.c.b16 %v399, %v396
        %v538 = vpack.c.b16 %v403, %v400
        %v539 = vpack.c.b16 %v404, %v401
        %v540 = vpack.c.b16 %v405, %v402
        %v541 = vpack.c.b16 %v409, %v406
        %v542 = vpack.c.b16 %v410, %v407
        %v543 = vpack.c.b16 %v411, %v408
        %v544 = vpack.c.b16 %v415, %v412
        %v545 = vpack.c.b16 %v416, %v413
        %v546 = vpack.c.b16 %v417, %v414
        %v547 = vpack.c.b16 %v421, %v418
        %v548 = vpack.c.b16 %v422, %v419
        %v549 = vpack.c.b16 %v423, %v420
        %v550 = vpack.c.b16 %v427, %v424
        %v551 = vpack.c.b16 %v428, %v425
        %v552 = vpack.c.b16 %v429, %v426
        %v553 = vpack.c.b16 %v433, %v430
        %v554 = vpack.c.b16 %v434, %v431
        %v555 = vpack.c.b16 %v435, %v432
        %v556 = vpack.c.b16 %v439, %v436
        %v557 = vpack.c.b16 %v440, %v437
        %v558 = vpack.c.b16 %v441, %v438
        %v559 = vpack.c.b16 %v445, %v442
        %v560 = vpack.c.b16 %v446, %v443
        %v561 = vpack.c.b16 %v447, %v444
        %v562 = vpack.c.b16 %v451, %v448
        %v563 = vpack.c.b16 %v452, %v449
        %v564 = vpack.c.b16 %v453, %v450
        %v565 = vpack.c.b16 %v457, %v454
        %v566 = vpack.c.b16 %v458, %v455
        %v567 = vpack.c.b16 %v459, %v456
        %v568 = vpack.c.b16 %v463, %v460
        %v569 = vpack.c.b16 %v464, %v461
        %v570 = vpack.c.b16 %v465, %v462
        %v571 = vpack.c.b16 %v469, %v466
        %v572 = vpack.c.b16 %v470, %v467
        %v573 = vpack.c.b16 %v471, %v468
        %v574 = vpack.c.b16 %v475, %v472
        %v575 = vpack.c.b16 %v476, %v473
        %v576 = vpack.c.b16 %v477, %v474
        %v577 = vpack.c.b16 %v481, %v478
        %v578 = vpack.c.b16 %v482, %v479
        %v579 = vpack.c.b16 %v483, %v480
        %v580 = vpack.c.b16 %v487, %v484
        %v581 = vpack.c.b16 %v488, %v485
        %v582 = vpack.c.b16 %v489, %v486
        %v583 = vpack.c.b16 %v493, %v490
        %v584 = vpack.c.b16 %v494, %v491
        %v585 = vpack.c.b16 %v495, %v492
        %v586 = vpack.c.b16 %v499, %v496
        %v587 = vpack.c.b16 %v500, %v497
        %v588 = vpack.c.b16 %v501, %v498
        %v589 = vpack.c.b16 %v505, %v502
        %v590 = vpack.c.b16 %v506, %v503
        %v591 = vpack.c.b16 %v507, %v504
        %v592 = vpack.c.b16 %v511, %v508
        %v593 = vpack.c.b16 %v512, %v509
        %v594 = vpack.c.b16 %v513, %v510
        %v595 = vpack.c.b16 %v517, %v514
        %v596 = vpack.c.b16 %v518, %v515
        %v597 = vpack.c.b16 %v519, %v516
        %v598 = vpack.c.b16 %v523, %v520
        %v599 = vpack.c.b16 %v524, %v521
        %v600 = vpack.c.b16 %v525, %v522
        %v601 = vpack.c.b16 %v529, %v526
        %v602 = vpack.c.b16 %v530, %v527
        %v603 = vpack.c.b16 %v531, %v528
        %676 = vmatpush.bf16.msra.mxu0 %v553
        %677 = vmatpush.bf16.msra.mxu0 %v550
        %678 = vmatpush.bf16.msra.mxu0 %v547
        %679 = vmatpush.bf16.msra.mxu0 %v544
        %680 = vmatpush.bf16.msra.mxu0 %v541
        %681 = vmatpush.bf16.msra.mxu0 %v538
        %682 = vmatpush.bf16.msra.mxu0 %v535
        %683 = vmatpush.bf16.msra.mxu0 %v532
        %684 = vmatmul.bf16.gmra.mxu0 %v286
        %v685 = vpop.f32.mrf.mxu0
        %v686 = vadd.f32 0.0, %v685
        %v687 = vpop.f32.mrf.mxu0
        %688 = vdwg.mxu0
        %689 = vmatpush.bf16.msra.mxu0 %v577
        %690 = vmatpush.bf16.msra.mxu0 %v574
        %691 = vmatpush.bf16.msra.mxu0 %v571
        %692 = vmatpush.bf16.msra.mxu0 %v568
        %693 = vmatpush.bf16.msra.mxu0 %v565
        %694 = vmatpush.bf16.msra.mxu0 %v562
        %695 = vmatpush.bf16.msra.mxu0 %v559
        %696 = vmatpush.bf16.msra.mxu0 %v556
        %697 = vmatmul.bf16.gmra.mxu0 %v287
        %v698 = vpop.f32.mrf.mxu0
        %v699 = vadd.f32 %v686, %v698
        %v700 = vpop.f32.mrf.mxu0
        %701 = vdwg.mxu0
        %702 = vmatpush.bf16.msra.mxu0 %v601
        %703 = vmatpush.bf16.msra.mxu0 %v598
        %704 = vmatpush.bf16.msra.mxu0 %v595
        %705 = vmatpush.bf16.msra.mxu0 %v592
        %706 = vmatpush.bf16.msra.mxu0 %v589
        %707 = vmatpush.bf16.msra.mxu0 %v586
        %708 = vmatpush.bf16.msra.mxu0 %v583
        %709 = vmatpush.bf16.msra.mxu0 %v580
        %710 = vmatmul.bf16.gmra.mxu0 %v288
        %v711 = vpop.f32.mrf.mxu0
        %v712 = vadd.f32 %v699, %v711
        %v713 = vpop.f32.mrf.mxu0
        %714 = vdwg.mxu0
        %715 = vmatpush.bf16.msra.mxu0 %v554
        %716 = vmatpush.bf16.msra.mxu0 %v551
        %717 = vmatpush.bf16.msra.mxu0 %v548
        %718 = vmatpush.bf16.msra.mxu0 %v545
        %719 = vmatpush.bf16.msra.mxu0 %v542
        %720 = vmatpush.bf16.msra.mxu0 %v539
        %721 = vmatpush.bf16.msra.mxu0 %v536
        %722 = vmatpush.bf16.msra.mxu0 %v533
        %723 = vmatmul.bf16.gmra.mxu0 %v286
        %v724 = vpop.f32.mrf.mxu0
        %v725 = vadd.f32 0.0, %v724
        %v726 = vpop.f32.mrf.mxu0
        %727 = vdwg.mxu0
        %728 = vmatpush.bf16.msra.mxu0 %v578
        %729 = vmatpush.bf16.msra.mxu0 %v575
        %730 = vmatpush.bf16.msra.mxu0 %v572
        %731 = vmatpush.bf16.msra.mxu0 %v569
        %732 = vmatpush.bf16.msra.mxu0 %v566
        %733 = vmatpush.bf16.msra.mxu0 %v563
        %734 = vmatpush.bf16.msra.mxu0 %v560
        %735 = vmatpush.bf16.msra.mxu0 %v557
        %736 = vmatmul.bf16.gmra.mxu0 %v287
        %v737 = vpop.f32.mrf.mxu0
        %v738 = vadd.f32 %v725, %v737
        %v739 = vpop.f32.mrf.mxu0
        %740 = vdwg.mxu0
        %741 = vmatpush.bf16.msra.mxu0 %v602
        %742 = vmatpush.bf16.msra.mxu0 %v599
        %743 = vmatpush.bf16.msra.mxu0 %v596
        %744 = vmatpush.bf16.msra.mxu0 %v593
        %745 = vmatpush.bf16.msra.mxu0 %v590
        %746 = vmatpush.bf16.msra.mxu0 %v587
        %747 = vmatpush.bf16.msra.mxu0 %v584
        %748 = vmatpush.bf16.msra.mxu0 %v581
        %749 = vmatmul.bf16.gmra.mxu0 %v288
        %v750 = vpop.f32.mrf.mxu0
        %v751 = vadd.f32 %v738, %v750
        %v752 = vpop.f32.mrf.mxu0
        %753 = vdwg.mxu0
        %754 = vmatpush.bf16.msra.mxu0 %v555
        %755 = vmatpush.bf16.msra.mxu0 %v552
        %756 = vmatpush.bf16.msra.mxu0 %v549
        %757 = vmatpush.bf16.msra.mxu0 %v546
        %758 = vmatpush.bf16.msra.mxu0 %v543
        %759 = vmatpush.bf16.msra.mxu0 %v540
        %760 = vmatpush.bf16.msra.mxu0 %v537
        %761 = vmatpush.bf16.msra.mxu0 %v534
        %762 = vmatmul.bf16.gmra.mxu0 %v286
        %v763 = vpop.f32.mrf.mxu0
        %v764 = vadd.f32 0.0, %v763
        %v765 = vpop.f32.mrf.mxu0
        %766 = vdwg.mxu0
        %767 = vmatpush.bf16.msra.mxu0 %v579
        %768 = vmatpush.bf16.msra.mxu0 %v576
        %769 = vmatpush.bf16.msra.mxu0 %v573
        %770 = vmatpush.bf16.msra.mxu0 %v570
        %771 = vmatpush.bf16.msra.mxu0 %v567
        %772 = vmatpush.bf16.msra.mxu0 %v564
        %773 = vmatpush.bf16.msra.mxu0 %v561
        %774 = vmatpush.bf16.msra.mxu0 %v558
        %775 = vmatmul.bf16.gmra.mxu0 %v287
        %v776 = vpop.f32.mrf.mxu0
        %v777 = vadd.f32 %v764, %v776
        %v778 = vpop.f32.mrf.mxu0
        %779 = vdwg.mxu0
        %780 = vmatpush.bf16.msra.mxu0 %v603
        %781 = vmatpush.bf16.msra.mxu0 %v600
        %782 = vmatpush.bf16.msra.mxu0 %v597
        %783 = vmatpush.bf16.msra.mxu0 %v594
        %784 = vmatpush.bf16.msra.mxu0 %v591
        %785 = vmatpush.bf16.msra.mxu0 %v588
        %786 = vmatpush.bf16.msra.mxu0 %v585
        %787 = vmatpush.bf16.msra.mxu0 %v582
        %788 = vmatmul.bf16.gmra.mxu0 %v288
        %v789 = vpop.f32.mrf.mxu0
        %v790 = vadd.f32 %v777, %v789
        %v791 = vpop.f32.mrf.mxu0
        %792 = vdwg.mxu0
        %v793 = vpack.c.bf16 %v712, %v712
        %v794 = vpack.c.bf16 %v751, %v751
        %795 = vmatpush.bf16.xpose.msra.mxu0 0
        %796 = vmatpush.bf16.xpose.msra.mxu0 0
        %797 = vmatpush.bf16.xpose.msra.mxu0 0
        %798 = vmatpush.bf16.xpose.msra.mxu0 0
        %799 = vmatpush.bf16.xpose.msra.mxu0 0
        %800 = vmatpush.bf16.xpose.msra.mxu0 0
        %801 = vmatpush.bf16.xpose.msra.mxu0 0
        %802 = vmatpush.bf16.xpose.msra.mxu0 %v794
        %803 = vmatmul.bf16.gmra.mxu0 %v793
        %v804 = vpop.f32.mrf.mxu0
        %v805 = vadd.f32 0.0, %v804
        %v806 = vpop.f32.mrf.mxu0
        %807 = vdwg.mxu0
        %v808 = vlaneseq
        %v809 = vshrl.u32 %v808, 7
        %v810 = vlaneseq
        %v811 = vand.u32 %v810, 127
        %vm812 = vcmp.le.s32.totalorder %v811, %v809
        %v813 = vsel %vm812, %v805, -inf
        %vm814 = vcmask 64512
        %v815 = vsel %vm814, %v813, -inf
        %816 = vmax.xlane.f32.xlu0 %v815
        %v817 = vpop.xlane.xlu0 %816
        %v818 = vsub.f32 %v813, %v817
        %v819 = vmul.f32 %v818, 1.442695
        %v820 = vpow.pop %v819
        %v821 = vsel %vm814, %v820, 0.0
        %822 = vadd.xlane.f32.xlu0 %v821
        %v823 = vpop.xlane.xlu0 %822
        %v824 = vpack.c.bf16 %v820, %v820
        %v825 = vpack.c.bf16 %v790, %v790
        %v827 = vsel %vm814, %v824, 0
        %vm829 = vcmask 1043456
        %v831 = vsel %vm829, %v825, 0
        %833 = vmatpush.bf16.msra.mxu0 0
        %834 = vmatpush.bf16.msra.mxu0 0
        %835 = vmatpush.bf16.msra.mxu0 0
        %836 = vmatpush.bf16.msra.mxu0 0
        %837 = vmatpush.bf16.msra.mxu0 0
        %838 = vmatpush.bf16.msra.mxu0 0
        %839 = vmatpush.bf16.msra.mxu0 0
        %840 = vmatpush.bf16.msra.mxu0 %v831
        %841 = vmatmul.bf16.gmra.mxu0 %v827
        %v842 = vpop.f32.mrf.mxu0
        %v843 = vadd.f32 0.0, %v842
        %v844 = vpop.f32.mrf.mxu0
        %845 = vdwg.mxu0
        %v846 = vrcp.pop %v823
        %v847 = vmul.f32 %v843, %v846
        %848 = vst [vmem:[%s178] sm:$0xff] %v847
        %s849 = sand.u32 %s75, 1
        %s850 = scalar_lea.sflag [#allocation4], %s849
        %s851 = sand.u32 %s75, 1
        %s852 = smul.addr %s851, 8
        %s853 = scalar_lea.vmem [#allocation7], %s852
        // Predicated region
        $region37: #{tpu_custom_call.1} parent=27 // pred_check
          %p854 = pneg %p85
        $region38: #{tpu_custom_call.1} parent=27 // pred_check_branch
          %856 = sbr.rel (%p854) target = $region40
        $region39: #{tpu_custom_call.1} parent=27 // pred_region
          %858 = vsyncadd %s850, 0
          %s859 = smul.addr %s20, 8
          %s860 = scalar_lea.hbm %s2, %s859
          %s862 = sshll.u32 %s853, 4
          %s863 = int_to_ptr.vmem [resolvable:$true] %s862
          %s864 = sshll.u32 %s860, 4
          %s865 = int_to_ptr.hbm [resolvable:$true] %s864
          %867 = dma.vmem_to_hbm [thread:$0]  %s863, 128, %s865, %s850
        $region40: #{tpu_custom_call.1} parent=27 // pred_fallthru
          _
      $region28: #{tpu_custom_call.1} parent=5 // pred_fallthru
        _
      %p868 = scmp.le.s32.totalorder 2, %s15
      // Predicated region
      $region41: #{tpu_custom_call.1} parent=5 // pred_check
        %p869 = pneg %p868
      $region42: #{tpu_custom_call.1} parent=5 // pred_check_branch
        %871 = sbr.rel (%p869) target = $region44
      $region43: #{tpu_custom_call.1} parent=5 // pred_region
        %s872 = ssub.s32 %s15, 2
        // Predicated region
        $region45: #{tpu_custom_call.1} parent=43 // pred_check
          %p873 = pneg %p91
        $region46: #{tpu_custom_call.1} parent=43 // pred_check_branch
          %875 = sbr.rel (%p873) target = $region48
        $region47: #{tpu_custom_call.1} parent=43 // pred_region
          %s876 = sand.u32 %s76, 1
          %s877 = scalar_lea.sflag [#allocation4], %s876
          %s878 = sand.u32 %s76, 1
          %s879 = smul.addr %s878, 8
          %s880 = scalar_lea.vmem [#allocation7], %s879
          %882 = dma.done %s877, 128
        $region48: #{tpu_custom_call.1} parent=43 // pred_fallthru
          _
      $region44: #{tpu_custom_call.1} parent=5 // pred_fallthru
        _
    $region6: #{tpu_custom_call.1} parent=1 // loop_footer
      %s19 = sadd.s32 1, %s15
    $region7: #{tpu_custom_call.1} parent=1 // loop_footer_branch
      %14 = sbr.rel target = $region3
    $region8: #{tpu_custom_call.1} parent=1 // loop_exit
      _
    %883 = vsyncpa [#allocation3], 1
    %s884 = scalar_lea.sflag [#allocation3], 1
    %885 = vsyncpa %s884, 1
    %886 = vsyncpa [#allocation6], 1
    %887 = vsyncpa [#allocation4], 1
    %s888 = scalar_lea.sflag [#allocation4], 1
    %889 = vsyncpa %s888, 1

</llo_original>
